<compile_context>
chip_gen: v6e
topology: v6e:2x2x1
jax: 0.10.0
libtpu: 0.0.40
codegen_flags: <defaults>
</compile_context>

<pallas_src>
import functools
import math

import jax
import jax.numpy as jnp
from jax import lax
from jax.experimental import pallas as pl
from jax.experimental.pallas import tpu as pltpu

_LANES = 512        # lane-dense slab width (multiple of 128)
_TILE_ROWS = 512    # 512 x 512 x 4B = 1 MiB per f32 buffer


def _bits_to_uniform(bits):
    """uint32 random bits -> float32 uniform in [0, 1) (no int->float convert)."""
    f = lax.bitcast_convert_type(
        (bits >> jnp.uint32(9)) | jnp.uint32(0x3F800000), jnp.float32)
    return f - jnp.float32(1.0)


def _noise_dropout_kernel(*refs, variance, dropout_rate, add_noise,
                          apply_dropout):
    idx = 0
    x_ref = refs[idx]; idx += 1
    nbits_ref = None
    dbits_ref = None
    if add_noise:
        nbits_ref = refs[idx]; idx += 1
    if apply_dropout:
        dbits_ref = refs[idx]; idx += 1
    o_ref = refs[idx]

    x = x_ref[...].astype(jnp.float32)

    if add_noise:
        # x = x + randn_like(x) * variance  (Box-Muller, both outputs used).
        u = _bits_to_uniform(nbits_ref[...])
        half = u.shape[0] // 2
        u1 = u[:half]                       # radius uniform
        u2 = u[half:]                       # angle uniform
        # 1 - u1 lies in (0, 1] -> log is finite, r >= 0.
        r = jnp.sqrt(-2.0 * jnp.log(1.0 - u1))
        theta = jnp.float32(2.0 * math.pi) * u2
        z = jnp.concatenate([r * jnp.cos(theta), r * jnp.sin(theta)], axis=0)
        x = x + z * jnp.float32(variance)

    if apply_dropout:
        # Inverted dropout (training): zero w.p. p, scale survivors by 1/(1-p).
        # Mask straight from the raw bits: P((bits >> 1) < thresh) == p, with
        # both sides < 2^31 so signed/unsigned comparison semantics agree.
        thresh = jnp.uint32(min(int(round(dropout_rate * 2.0 ** 31)),
                                2 ** 31 - 1))
        keep = (dbits_ref[...] >> jnp.uint32(1)) >= thresh
        scale = jnp.float32(1.0 / (1.0 - dropout_rate))
        x = jnp.where(keep, x * scale, jnp.float32(0.0))

    o_ref[...] = x.astype(o_ref.dtype)


def noiselayer_forward(x, key, *, variance, dropout_rate, training=True):
    """Forward pass matching the PyTorch noiselayer module (NCHW input)."""
    if not training:
        # eval mode: no noise, nn.Dropout is identity.
        return x

    add_noise = float(variance) != 0.0
    apply_dropout = float(dropout_rate) > 0.0
    if not add_noise and not apply_dropout:
        return x

    orig_shape = x.shape
    orig_dtype = x.dtype
    total = int(x.size)

    # Flatten to a lane-dense slab; pad so the grid divides evenly.
    rows = pl.cdiv(total, _LANES)
    rows = max(8, ((rows + 7) // 8) * 8)          # sublane-friendly, even
    tr = min(_TILE_ROWS, rows)
    rows = ((rows + tr - 1) // tr) * tr           # no ragged last tile
    padded_total = rows * _LANES

    xf = x.reshape(-1)
    if padded_total != total:
        xf = jnp.pad(xf, (0, padded_total - total))
    x2d = xf.reshape(rows, _LANES)

    kn, kd = jax.random.split(key)
    inputs = [x2d]
    if add_noise:
        inputs.append(jax.random.bits(kn, (rows, _LANES), dtype=jnp.uint32))
    if apply_dropout:
        inputs.append(jax.random.bits(kd, (rows, _LANES), dtype=jnp.uint32))

    blk = pl.BlockSpec((tr, _LANES), lambda i: (i, 0))
    kernel = functools.partial(
        _noise_dropout_kernel,
        variance=float(variance),
        dropout_rate=float(dropout_rate),
        add_noise=add_noise,
        apply_dropout=apply_dropout,
    )

    out2d = pl.pallas_call(
        kernel,
        out_shape=jax.ShapeDtypeStruct((rows, _LANES), orig_dtype),
        grid=(rows // tr,),
        in_specs=[blk] * len(inputs),
        out_specs=blk,
        compiler_params=pltpu.CompilerParams(
            dimension_semantics=("parallel",)),
    )(*inputs)

    out = out2d.reshape(-1)
    if padded_total != total:
        out = out[:total]
    return out.reshape(orig_shape)


if __name__ == "__main__":
    key = jax.random.PRNGKey(0)
    kx, krand = jax.random.split(key)

    B, C, H, W = 2, 4, 16, 16
    x = jax.random.normal(kx, (B, C, H, W), dtype=jnp.float32)

    variance = 0.1
    dropout_rate = 0.2

    out = noiselayer_forward(x, krand, variance=variance,
                             dropout_rate=dropout_rate, training=True)
    out = jax.block_until_ready(out)
    assert out.shape == x.shape and out.dtype == x.dtype
    assert bool(jnp.all(jnp.isfinite(out)))

    # eval-mode sanity: identity
    out_eval = noiselayer_forward(x, krand, variance=variance,
                                  dropout_rate=dropout_rate, training=False)
    out_eval = jax.block_until_ready(out_eval)
    assert bool(jnp.allclose(out_eval, x))

    print("KERNEL_OK")
</pallas_src>

<mosaic_0001>
module attributes {stable_mosaic.version = 11 : i64} {
  func.func @_noise_dropout_kernel(%arg0: i32, %arg1: memref<8x512xf32, #tpu.memory_space<vmem>>, %arg2: memref<8x512xi32, #tpu.memory_space<vmem>>, %arg3: memref<8x512xi32, #tpu.memory_space<vmem>>, %arg4: memref<8x512xf32, #tpu.memory_space<vmem>>) attributes {dimension_semantics = [#tpu.dimension_semantics<parallel>], iteration_bounds = array<i64: 1>, scalar_prefetch = 0 : i64, scratch_operands = 0 : i64, tpu.core_type = #tpu.core_type<tc>, window_params = [{transform_indices = @transform_0, window_bounds = array<i64: 8, 512>}, {transform_indices = @transform_1, window_bounds = array<i64: 8, 512>}, {transform_indices = @transform_2, window_bounds = array<i64: 8, 512>}, {transform_indices = @transform_3, window_bounds = array<i64: 8, 512>}]} {
    %c0 = arith.constant 0 : index
    %c0_0 = arith.constant 0 : index
    %0 = vector.load %arg1[%c0, %c0_0] : memref<8x512xf32, #tpu.memory_space<vmem>>, vector<8x512xf32>
    %c0_1 = arith.constant 0 : index
    %c0_2 = arith.constant 0 : index
    %1 = vector.load %arg2[%c0_1, %c0_2] : memref<8x512xi32, #tpu.memory_space<vmem>>, vector<8x512xi32>
    %c9_i32 = arith.constant 9 : i32
    %2 = vector.broadcast %c9_i32 : i32 to vector<8x512xi32>
    %3 = arith.shrui %1, %2 : vector<8x512xi32>
    %c1065353216_i32 = arith.constant 1065353216 : i32
    %4 = vector.broadcast %c1065353216_i32 : i32 to vector<8x512xi32>
    %5 = arith.ori %3, %4 : vector<8x512xi32>
    %6 = tpu.bitcast %5 : vector<8x512xi32> -> vector<8x512xf32>
    %cst = arith.constant 1.000000e+00 : f32
    %7 = vector.broadcast %cst : f32 to vector<8x512xf32>
    %8 = arith.subf %6, %7 : vector<8x512xf32>
    %9 = vector.extract_strided_slice %8 {offsets = [0, 0], sizes = [4, 512], strides = [1, 1]} : vector<8x512xf32> to vector<4x512xf32>
    %10 = vector.extract_strided_slice %8 {offsets = [4, 0], sizes = [4, 512], strides = [1, 1]} : vector<8x512xf32> to vector<4x512xf32>
    %cst_3 = arith.constant 1.000000e+00 : f32
    %11 = vector.broadcast %cst_3 : f32 to vector<4x512xf32>
    %12 = arith.subf %11, %9 : vector<4x512xf32>
    %13 = math.log %12 : vector<4x512xf32>
    %cst_4 = arith.constant -2.000000e+00 : f32
    %14 = vector.broadcast %cst_4 : f32 to vector<4x512xf32>
    %15 = arith.mulf %14, %13 : vector<4x512xf32>
    %16 = math.sqrt %15 : vector<4x512xf32>
    %cst_5 = arith.constant 6.28318548 : f32
    %17 = vector.broadcast %cst_5 : f32 to vector<4x512xf32>
    %18 = arith.mulf %17, %10 : vector<4x512xf32>
    %19 = math.cos %18 : vector<4x512xf32>
    %20 = arith.mulf %16, %19 : vector<4x512xf32>
    %21 = math.sin %18 : vector<4x512xf32>
    %22 = arith.mulf %16, %21 : vector<4x512xf32>
    %23 = tpu.concatenate %20, %22 in 0 : vector<4x512xf32>, vector<4x512xf32> -> vector<8x512xf32>
    %cst_6 = arith.constant 1.000000e-01 : f32
    %24 = vector.broadcast %cst_6 : f32 to vector<8x512xf32>
    %25 = arith.mulf %23, %24 : vector<8x512xf32>
    %26 = arith.addf %0, %25 : vector<8x512xf32>
    %c0_7 = arith.constant 0 : index
    %c0_8 = arith.constant 0 : index
    %27 = vector.load %arg3[%c0_7, %c0_8] : memref<8x512xi32, #tpu.memory_space<vmem>>, vector<8x512xi32>
    %c1_i32 = arith.constant 1 : i32
    %28 = vector.broadcast %c1_i32 : i32 to vector<8x512xi32>
    %29 = arith.shrui %27, %28 : vector<8x512xi32>
    %c429496730_i32 = arith.constant 429496730 : i32
    %30 = vector.broadcast %c429496730_i32 : i32 to vector<8x512xi32>
    %31 = arith.cmpi uge, %29, %30 : vector<8x512xi32>
    %cst_9 = arith.constant 1.250000e+00 : f32
    %32 = vector.broadcast %cst_9 : f32 to vector<8x512xf32>
    %33 = arith.mulf %26, %32 : vector<8x512xf32>
    %cst_10 = arith.constant 0.000000e+00 : f32
    %34 = vector.broadcast %cst_10 : f32 to vector<8x512xf32>
    %35 = arith.select %31, %33, %34 : vector<8x512xi1>, vector<8x512xf32>
    %c0_11 = arith.constant 0 : index
    %c0_12 = arith.constant 0 : index
    %36 = vector.load %arg4[%c0_11, %c0_12] : memref<8x512xf32, #tpu.memory_space<vmem>>, vector<8x512xf32>
    tpu.vector_store %arg4[%c0_11, %c0_12], %35 {strides = array<i32>} : memref<8x512xf32, #tpu.memory_space<vmem>>, vector<8x512xf32>,
    return
  }
  func.func @transform_0(%arg0: i32) -> (i32, i32) {
    %c0_i32 = arith.constant 0 : i32
    %c0_i32_0 = arith.constant 0 : i32
    return %arg0, %c0_i32 : i32, i32
  }
  func.func @transform_1(%arg0: i32) -> (i32, i32) {
    %c0_i32 = arith.constant 0 : i32
    %c0_i32_0 = arith.constant 0 : i32
    return %arg0, %c0_i32 : i32, i32
  }
  func.func @transform_2(%arg0: i32) -> (i32, i32) {
    %c0_i32 = arith.constant 0 : i32
    %c0_i32_0 = arith.constant 0 : i32
    return %arg0, %c0_i32 : i32, i32
  }
  func.func @transform_3(%arg0: i32) -> (i32, i32) {
    %c0_i32 = arith.constant 0 : i32
    %c0_i32_0 = arith.constant 0 : i32
    return %arg0, %c0_i32 : i32, i32
  }
}

</mosaic_0001>

<llo_original>
// kernel: tpu_custom_call.1
$region0: #{tpu_custom_call.1}
  #allocation0 [shape = 'u32[]', space=smem, size = 0x4, offset = 0x4, fixed_abs, tag = 'smem constant byte address 0x4 - core index']
  #allocation1 [shape = 'u32[144,128]{1,0:T(1,128)}', space=vmem, size = 0x12000, scoped, tag = 'internal scratch']
  %s0 = inlined_call_operand.hbm [shape: f32[8,512], index: 0, kind: input, shape index: {}]
  %s1 = inlined_call_operand.hbm [shape: u32[8,512], index: 1, kind: input, shape index: {}]
  %s2 = inlined_call_operand.hbm [shape: u32[8,512], index: 2, kind: input, shape index: {}]
  %s3 = inlined_call_operand.hbm [shape: f32[8,512], index: 3, kind: output, shape index: {}]
  %s4 = sld [smem:[#allocation0]]
  $region34: #{tpu_custom_call.1} parent=0
    _
  %s6 = ssub.s32 1, %s4
  %s7 = scalar_select 0, %s6, %s4
  $region1: #{tpu_custom_call.1} parent=0
    #allocation2 [shape = 'u8[16384]{0}', space=vmem, size = 0x4000, scoped, tag = 'input window, operand 0, single buffered']
    #allocation3 [shape = 's32[1]{0}', space=sflag, size = 0x4, scoped, tag = 'scoped memory for tpu_custom_call.1']
    #allocation4 [shape = 's32[1]{0}', space=sflag, size = 0x4, scoped, tag = 'scoped memory for tpu_custom_call.1']
    #allocation5 [shape = 'u8[16384]{0}', space=vmem, size = 0x4000, scoped, tag = 'input window, operand 1, single buffered']
    #allocation6 [shape = 's32[1]{0}', space=sflag, size = 0x4, scoped, tag = 'scoped memory for tpu_custom_call.1']
    #allocation7 [shape = 'u8[16384]{0}', space=vmem, size = 0x4000, scoped, tag = 'input window, operand 2, single buffered']
    #allocation8 [shape = 'u8[16384]{0}', space=vmem, size = 0x4000, scoped, tag = 'output window, operand 0, single buffered']
    %8 = vsyncpa [#allocation3], 0
    %9 = vsyncpa [#allocation6], 0
    %10 = vsyncpa [#allocation4], 0
    // Predicated region
    $region2: #{tpu_custom_call.1} parent=1 // pred_check
      _
    $region3: #{tpu_custom_call.1} parent=1 // pred_check_branch
      %12 = sbr.rel (0) target = $region5
    $region4: #{tpu_custom_call.1} parent=1 // pred_region
      %s14 = ssub.s32 512, 512
      %15 = vsyncadd [#allocation3], %s14
      %s17 = sshll.u32 [#allocation2], 4
      %s18 = int_to_ptr.vmem [resolvable:$true] %s17
      %20 = dma.hbm_to_vmem [thread:$0]  %s0, 512, %s18, [#allocation3]
    $region5: #{tpu_custom_call.1} parent=1 // pred_fallthru
      _
    // Predicated region
    $region6: #{tpu_custom_call.1} parent=1 // pred_check
      _
    $region7: #{tpu_custom_call.1} parent=1 // pred_check_branch
      %22 = sbr.rel (0) target = $region9
    $region8: #{tpu_custom_call.1} parent=1 // pred_region
      %s24 = ssub.s32 512, 512
      %25 = vsyncadd [#allocation6], %s24
      %s27 = sshll.u32 [#allocation5], 4
      %s28 = int_to_ptr.vmem [resolvable:$true] %s27
      %30 = dma.hbm_to_vmem [thread:$0]  %s1, 512, %s28, [#allocation6]
    $region9: #{tpu_custom_call.1} parent=1 // pred_fallthru
      _
    // Predicated region
    $region10: #{tpu_custom_call.1} parent=1 // pred_check
      _
    $region11: #{tpu_custom_call.1} parent=1 // pred_check_branch
      %32 = sbr.rel (0) target = $region13
    $region12: #{tpu_custom_call.1} parent=1 // pred_region
      %s34 = ssub.s32 512, 512
      %35 = vsyncadd [#allocation6], %s34
      %s37 = sshll.u32 [#allocation7], 4
      %s38 = int_to_ptr.vmem [resolvable:$true] %s37
      %40 = dma.hbm_to_vmem [thread:$0]  %s2, 512, %s38, [#allocation6]
    $region13: #{tpu_custom_call.1} parent=1 // pred_fallthru
      _
    // Predicated region
    $region14: #{tpu_custom_call.1} parent=1 // pred_check
      _
    $region15: #{tpu_custom_call.1} parent=1 // pred_check_branch
      %42 = sbr.rel (0) target = $region17
    $region16: #{tpu_custom_call.1} parent=1 // pred_region
      %43 = dma.done [#allocation3], 512
    $region17: #{tpu_custom_call.1} parent=1 // pred_fallthru
      _
    // Predicated region
    $region18: #{tpu_custom_call.1} parent=1 // pred_check
      _
    $region19: #{tpu_custom_call.1} parent=1 // pred_check_branch
      %45 = sbr.rel (0) target = $region21
    $region20: #{tpu_custom_call.1} parent=1 // pred_region
      %46 = dma.done [#allocation6], 512
    $region21: #{tpu_custom_call.1} parent=1 // pred_fallthru
      _
    // Predicated region
    $region22: #{tpu_custom_call.1} parent=1 // pred_check
      _
    $region23: #{tpu_custom_call.1} parent=1 // pred_check_branch
      %48 = sbr.rel (0) target = $region25
    $region24: #{tpu_custom_call.1} parent=1 // pred_region
      %49 = dma.done [#allocation6], 512
    $region25: #{tpu_custom_call.1} parent=1 // pred_fallthru
      _
    %v50 = vld [vmem:[#allocation2] sm:$0xff]
    %v51 = vld [vmem:[#allocation2 + $0x8] sm:$0xff]
    %v52 = vld [vmem:[#allocation2 + $0x10] sm:$0xff]
    %v53 = vld [vmem:[#allocation2 + $0x18] sm:$0xff]
    %v54 = vld [vmem:[#allocation5] sm:$0xff]
    %v55 = vld [vmem:[#allocation5 + $0x8] sm:$0xff]
    %v56 = vld [vmem:[#allocation5 + $0x10] sm:$0xff]
    %v57 = vld [vmem:[#allocation5 + $0x18] sm:$0xff]
    %v58 = vshrl.u32 %v54, 9
    %v59 = vshrl.u32 %v55, 9
    %v60 = vshrl.u32 %v56, 9
    %v61 = vshrl.u32 %v57, 9
    %v62 = vor.u32 %v58, 1065353216
    %v63 = vor.u32 %v59, 1065353216
    %v64 = vor.u32 %v60, 1065353216
    %v65 = vor.u32 %v61, 1065353216
    %v70 = vsub.f32 %v62, 1.0
    %v71 = vsub.f32 %v63, 1.0
    %v72 = vsub.f32 %v64, 1.0
    %v73 = vsub.f32 %v65, 1.0
    %v74 = vsub.f32 1.0, %v70
    %v75 = vsub.f32 1.0, %v71
    %v76 = vsub.f32 1.0, %v72
    %v77 = vsub.f32 1.0, %v73
    %v78 = vlog2.pop %v74
    %v79 = vmul.f32 %v78, 0.6931472
    %v80 = vlog2.pop %v75
    %v81 = vmul.f32 %v80, 0.6931472
    %v82 = vlog2.pop %v76
    %v83 = vmul.f32 %v82, 0.6931472
    %v84 = vlog2.pop %v77
    %v85 = vmul.f32 %v84, 0.6931472
    %v86 = vmul.f32 %v79, -2.0
    %v87 = vmul.f32 %v81, -2.0
    %v88 = vmul.f32 %v83, -2.0
    %v89 = vmul.f32 %v85, -2.0
    %v90 = vrsqrt.pop %v86
    %v91 = vmul.f32 %v86, %v90
    %vm92 = vcmp.eq.f32.partialorder %v86, inf
    %v93 = vsel %vm92, %v86, %v91
    %vm94 = vcmp.eq.f32.partialorder %v86, 0.0
    %v95 = vand.u32 %v86, 2147483648
    %v96 = vsel %vm94, %v95, %v93
    %v97 = vrsqrt.pop %v87
    %v98 = vmul.f32 %v87, %v97
    %vm99 = vcmp.eq.f32.partialorder %v87, inf
    %v100 = vsel %vm99, %v87, %v98
    %vm101 = vcmp.eq.f32.partialorder %v87, 0.0
    %v102 = vand.u32 %v87, 2147483648
    %v103 = vsel %vm101, %v102, %v100
    %v104 = vrsqrt.pop %v88
    %v105 = vmul.f32 %v88, %v104
    %vm106 = vcmp.eq.f32.partialorder %v88, inf
    %v107 = vsel %vm106, %v88, %v105
    %vm108 = vcmp.eq.f32.partialorder %v88, 0.0
    %v109 = vand.u32 %v88, 2147483648
    %v110 = vsel %vm108, %v109, %v107
    %v111 = vrsqrt.pop %v89
    %v112 = vmul.f32 %v89, %v111
    %vm113 = vcmp.eq.f32.partialorder %v89, inf
    %v114 = vsel %vm113, %v89, %v112
    %vm115 = vcmp.eq.f32.partialorder %v89, 0.0
    %v116 = vand.u32 %v89, 2147483648
    %v117 = vsel %vm115, %v116, %v114
    %v118 = vmul.f32 %v70, 6.2831855
    %v119 = vmul.f32 %v71, 6.2831855
    %v120 = vmul.f32 %v72, 6.2831855
    %v121 = vmul.f32 %v73, 6.2831855
    %v122 = vand.u32 2147483647, %v118
    %vm123 = vcmp.le.f32.partialorder %v122, 0.7853982
    %vm124 = vcmp.lt.s32.totalorder %v118, 0
    %v125 = vand.u32 %v118, 2139095040
    %v126 = vshrl.u32 %v125, 23
    %v127 = vsub.s32 %v126, 127
    %v128 = vand.u32 2147483647, %v118
    %v129 = vand.u32 %v128, 8388607
    %v130 = vor.u32 %v129, 8388608
    %v131 = vsub.s32 0, %v130
    %v132 = vadd.s32 %v127, 1
    %vm133 = vcmp.gt.s32.totalorder %v132, 0
    %v134 = vsel %vm133, %v132, 0
    %v135 = vshrl.u32 %v134, 5
    %v136 = vand.u32 %v134, 31
    %v137 = vsub.s32 32, %v136
    %v138 = vshrl.u32 683565275, %v137
    %v139 = vshll.u32 683565275, %v136
    %v140 = vshrl.u32 2475754826, %v137
    %v141 = vor.u32 %v139, %v140
    %v142 = vshll.u32 2475754826, %v136
    %v143 = vshrl.u32 2131351028, %v137
    %v144 = vor.u32 %v142, %v143
    %v145 = vshll.u32 2131351028, %v136
    %v146 = vshrl.u32 2102212464, %v137
    %v147 = vor.u32 %v145, %v146
    %v148 = vshll.u32 2102212464, %v136
    %v149 = vshrl.u32 920167782, %v137
    %v150 = vor.u32 %v148, %v149
    %v151 = vshll.u32 920167782, %v136
    %v152 = vshrl.u32 1326507024, %v137
    %v153 = vor.u32 %v151, %v152
    %vm154 = vcmp.lt.s32.totalorder %v135, 1
    %vm155 = vcmp.lt.s32.totalorder %v135, 2
    %vm156 = vcmp.lt.s32.totalorder %v135, 3
    %vm157 = vcmp.lt.s32.totalorder %v135, 4
    %v158 = vsel %vm154, %v138, %v141
    %v159 = vsel %vm157, %v147, 2102212464
    %v160 = vsel %vm156, %v144, %v159
    %v161 = vsel %vm155, %v158, %v160
    %v162 = vsel %vm154, %v141, %v144
    %v163 = vsel %vm157, %v150, 920167782
    %v164 = vsel %vm156, %v147, %v163
    %v165 = vsel %vm155, %v162, %v164
    %v166 = vsel %vm154, %v144, %v147
    %v167 = vsel %vm157, %v153, 1326507024
    %v168 = vsel %vm156, %v150, %v167
    %v169 = vsel %vm155, %v166, %v168
    %v170 = vshll.u32 %v130, 8
    %v171 = vmul.u32.u64.compose %v170, %v169
    %v172 = vextract.low.u32 %v171
    %v173 = vextract.high.u32 %v171
    %v174 = vmul.u32.u64.compose %v170, %v165
    %v175 = vextract.low.u32 %v174
    %v176 = vextract.high.u32 %v174
    %v177 = vmul.u32 %v170, %v161
    %v178 = vadd.s32 %v173, %v175
    %vm179 = vc.u32 %v173, %v175
    %v180 = vadd.s32 %v176, 1
    %v181 = vsel %vm179, %v180, %v176
    %v182 = vadd.s32 %v177, %v181
    %v183 = vadd.s32 %v182, 536870912
    %v184 = vshrl.u32 %v183, 30
    %v185 = vshll.u32 %v184, 30
    %v186 = vsub.s32 %v182, %v185
    %vm187 = vcmp.lt.s32.totalorder %v186, 0
    %v188 = vsub.s32 0, %v186
    %v189 = vsel %vm187, %v188, %v186
    %v190 = vclz %v189
    %v191 = vsub.s32 %v190, 2
    %vm192 = vcmp.gt.s32.totalorder 0, %v191
    %v193 = vsel %vm192, 0, %v191
    %v194 = vsub.s32 32, %v193
    %v195 = vshll.u32 %v186, %v193
    %v196 = vshrl.u32 %v178, %v194
    %v197 = vor.u32 %v195, %v196
    %v198 = vsub.s32 4294967266, %v193
    %v199 = vadd.s32 %v198, 127
    %v200 = vshll.u32 %v199, 23
    %v201 = vor.u32 4788187, %v200
    %v202 = vand.u32 2147483647, %v201
    %v204 = vcvt.s32.f32 %v197
    %v205 = vmul.f32 %v204, %v202
    %v206 = vxor.u32 %v205, 2147483648
    %v207 = vsel %vm124, %v206, %v205
    %v208 = vsub.s32 4, %v184
    %v209 = vsel %vm124, %v208, %v184
    %v210 = vsel %vm123, %v118, %v207
    %v211 = vsel %vm123, 0, %v209
    %v212 = vcosq.f32.pop %v210
    %v213 = vsinq.f32.pop %v210
    %vm214 = vweird.f32 %v118
    %v215 = vand.u32 %v211, 3
    %vm216 = vcmp.lt.s32.totalorder %v215, 2
    %vm217 = vcmp.eq.s32.totalorder %v215, 0
    %v218 = vxor.u32 %v213, 2147483648
    %v219 = vsel %vm217, %v212, %v218
    %vm220 = vcmp.eq.s32.totalorder %v215, 2
    %v221 = vxor.u32 %v212, 2147483648
    %v222 = vsel %vm220, %v221, %v213
    %v223 = vsel %vm216, %v219, %v222
    %v224 = vsel %vm214, nan, %v223
    %v225 = vand.u32 2147483647, %v119
    %vm226 = vcmp.le.f32.partialorder %v225, 0.7853982
    %vm227 = vcmp.lt.s32.totalorder %v119, 0
    %v228 = vand.u32 %v119, 2139095040
    %v229 = vshrl.u32 %v228, 23
    %v230 = vsub.s32 %v229, 127
    %v231 = vand.u32 2147483647, %v119
    %v232 = vand.u32 %v231, 8388607
    %v233 = vor.u32 %v232, 8388608
    %v234 = vsub.s32 0, %v233
    %v235 = vadd.s32 %v230, 1
    %vm236 = vcmp.gt.s32.totalorder %v235, 0
    %v237 = vsel %vm236, %v235, 0
    %v238 = vshrl.u32 %v237, 5
    %v239 = vand.u32 %v237, 31
    %v240 = vsub.s32 32, %v239
    %v241 = vshrl.u32 683565275, %v240
    %v242 = vshll.u32 683565275, %v239
    %v243 = vshrl.u32 2475754826, %v240
    %v244 = vor.u32 %v242, %v243
    %v245 = vshll.u32 2475754826, %v239
    %v246 = vshrl.u32 2131351028, %v240
    %v247 = vor.u32 %v245, %v246
    %v248 = vshll.u32 2131351028, %v239
    %v249 = vshrl.u32 2102212464, %v240
    %v250 = vor.u32 %v248, %v249
    %v251 = vshll.u32 2102212464, %v239
    %v252 = vshrl.u32 920167782, %v240
    %v253 = vor.u32 %v251, %v252
    %v254 = vshll.u32 920167782, %v239
    %v255 = vshrl.u32 1326507024, %v240
    %v256 = vor.u32 %v254, %v255
    %vm257 = vcmp.lt.s32.totalorder %v238, 1
    %vm258 = vcmp.lt.s32.totalorder %v238, 2
    %vm259 = vcmp.lt.s32.totalorder %v238, 3
    %vm260 = vcmp.lt.s32.totalorder %v238, 4
    %v261 = vsel %vm257, %v241, %v244
    %v262 = vsel %vm260, %v250, 2102212464
    %v263 = vsel %vm259, %v247, %v262
    %v264 = vsel %vm258, %v261, %v263
    %v265 = vsel %vm257, %v244, %v247
    %v266 = vsel %vm260, %v253, 920167782
    %v267 = vsel %vm259, %v250, %v266
    %v268 = vsel %vm258, %v265, %v267
    %v269 = vsel %vm257, %v247, %v250
    %v270 = vsel %vm260, %v256, 1326507024
    %v271 = vsel %vm259, %v253, %v270
    %v272 = vsel %vm258, %v269, %v271
    %v273 = vshll.u32 %v233, 8
    %v274 = vmul.u32.u64.compose %v273, %v272
    %v275 = vextract.low.u32 %v274
    %v276 = vextract.high.u32 %v274
    %v277 = vmul.u32.u64.compose %v273, %v268
    %v278 = vextract.low.u32 %v277
    %v279 = vextract.high.u32 %v277
    %v280 = vmul.u32 %v273, %v264
    %v281 = vadd.s32 %v276, %v278
    %vm282 = vc.u32 %v276, %v278
    %v283 = vadd.s32 %v279, 1
    %v284 = vsel %vm282, %v283, %v279
    %v285 = vadd.s32 %v280, %v284
    %v286 = vadd.s32 %v285, 536870912
    %v287 = vshrl.u32 %v286, 30
    %v288 = vshll.u32 %v287, 30
    %v289 = vsub.s32 %v285, %v288
    %vm290 = vcmp.lt.s32.totalorder %v289, 0
    %v291 = vsub.s32 0, %v289
    %v292 = vsel %vm290, %v291, %v289
    %v293 = vclz %v292
    %v294 = vsub.s32 %v293, 2
    %vm295 = vcmp.gt.s32.totalorder 0, %v294
    %v296 = vsel %vm295, 0, %v294
    %v297 = vsub.s32 32, %v296
    %v298 = vshll.u32 %v289, %v296
    %v299 = vshrl.u32 %v281, %v297
    %v300 = vor.u32 %v298, %v299
    %v301 = vsub.s32 4294967266, %v296
    %v302 = vadd.s32 %v301, 127
    %v303 = vshll.u32 %v302, 23
    %v304 = vor.u32 4788187, %v303
    %v305 = vand.u32 2147483647, %v304
    %v307 = vcvt.s32.f32 %v300
    %v308 = vmul.f32 %v307, %v305
    %v309 = vxor.u32 %v308, 2147483648
    %v310 = vsel %vm227, %v309, %v308
    %v311 = vsub.s32 4, %v287
    %v312 = vsel %vm227, %v311, %v287
    %v313 = vsel %vm226, %v119, %v310
    %v314 = vsel %vm226, 0, %v312
    %v315 = vcosq.f32.pop %v313
    %v316 = vsinq.f32.pop %v313
    %vm317 = vweird.f32 %v119
    %v318 = vand.u32 %v314, 3
    %vm319 = vcmp.lt.s32.totalorder %v318, 2
    %vm320 = vcmp.eq.s32.totalorder %v318, 0
    %v321 = vxor.u32 %v316, 2147483648
    %v322 = vsel %vm320, %v315, %v321
    %vm323 = vcmp.eq.s32.totalorder %v318, 2
    %v324 = vxor.u32 %v315, 2147483648
    %v325 = vsel %vm323, %v324, %v316
    %v326 = vsel %vm319, %v322, %v325
    %v327 = vsel %vm317, nan, %v326
    %v328 = vand.u32 2147483647, %v120
    %vm329 = vcmp.le.f32.partialorder %v328, 0.7853982
    %vm330 = vcmp.lt.s32.totalorder %v120, 0
    %v331 = vand.u32 %v120, 2139095040
    %v332 = vshrl.u32 %v331, 23
    %v333 = vsub.s32 %v332, 127
    %v334 = vand.u32 2147483647, %v120
    %v335 = vand.u32 %v334, 8388607
    %v336 = vor.u32 %v335, 8388608
    %v337 = vsub.s32 0, %v336
    %v338 = vadd.s32 %v333, 1
    %vm339 = vcmp.gt.s32.totalorder %v338, 0
    %v340 = vsel %vm339, %v338, 0
    %v341 = vshrl.u32 %v340, 5
    %v342 = vand.u32 %v340, 31
    %v343 = vsub.s32 32, %v342
    %v344 = vshrl.u32 683565275, %v343
    %v345 = vshll.u32 683565275, %v342
    %v346 = vshrl.u32 2475754826, %v343
    %v347 = vor.u32 %v345, %v346
    %v348 = vshll.u32 2475754826, %v342
    %v349 = vshrl.u32 2131351028, %v343
    %v350 = vor.u32 %v348, %v349
    %v351 = vshll.u32 2131351028, %v342
    %v352 = vshrl.u32 2102212464, %v343
    %v353 = vor.u32 %v351, %v352
    %v354 = vshll.u32 2102212464, %v342
    %v355 = vshrl.u32 920167782, %v343
    %v356 = vor.u32 %v354, %v355
    %v357 = vshll.u32 920167782, %v342
    %v358 = vshrl.u32 1326507024, %v343
    %v359 = vor.u32 %v357, %v358
    %vm360 = vcmp.lt.s32.totalorder %v341, 1
    %vm361 = vcmp.lt.s32.totalorder %v341, 2
    %vm362 = vcmp.lt.s32.totalorder %v341, 3
    %vm363 = vcmp.lt.s32.totalorder %v341, 4
    %v364 = vsel %vm360, %v344, %v347
    %v365 = vsel %vm363, %v353, 2102212464
    %v366 = vsel %vm362, %v350, %v365
    %v367 = vsel %vm361, %v364, %v366
    %v368 = vsel %vm360, %v347, %v350
    %v369 = vsel %vm363, %v356, 920167782
    %v370 = vsel %vm362, %v353, %v369
    %v371 = vsel %vm361, %v368, %v370
    %v372 = vsel %vm360, %v350, %v353
    %v373 = vsel %vm363, %v359, 1326507024
    %v374 = vsel %vm362, %v356, %v373
    %v375 = vsel %vm361, %v372, %v374
    %v376 = vshll.u32 %v336, 8
    %v377 = vmul.u32.u64.compose %v376, %v375
    %v378 = vextract.low.u32 %v377
    %v379 = vextract.high.u32 %v377
    %v380 = vmul.u32.u64.compose %v376, %v371
    %v381 = vextract.low.u32 %v380
    %v382 = vextract.high.u32 %v380
    %v383 = vmul.u32 %v376, %v367
    %v384 = vadd.s32 %v379, %v381
    %vm385 = vc.u32 %v379, %v381
    %v386 = vadd.s32 %v382, 1
    %v387 = vsel %vm385, %v386, %v382
    %v388 = vadd.s32 %v383, %v387
    %v389 = vadd.s32 %v388, 536870912
    %v390 = vshrl.u32 %v389, 30
    %v391 = vshll.u32 %v390, 30
    %v392 = vsub.s32 %v388, %v391
    %vm393 = vcmp.lt.s32.totalorder %v392, 0
    %v394 = vsub.s32 0, %v392
    %v395 = vsel %vm393, %v394, %v392
    %v396 = vclz %v395
    %v397 = vsub.s32 %v396, 2
    %vm398 = vcmp.gt.s32.totalorder 0, %v397
    %v399 = vsel %vm398, 0, %v397
    %v400 = vsub.s32 32, %v399
    %v401 = vshll.u32 %v392, %v399
    %v402 = vshrl.u32 %v384, %v400
    %v403 = vor.u32 %v401, %v402
    %v404 = vsub.s32 4294967266, %v399
    %v405 = vadd.s32 %v404, 127
    %v406 = vshll.u32 %v405, 23
    %v407 = vor.u32 4788187, %v406
    %v408 = vand.u32 2147483647, %v407
    %v410 = vcvt.s32.f32 %v403
    %v411 = vmul.f32 %v410, %v408
    %v412 = vxor.u32 %v411, 2147483648
    %v413 = vsel %vm330, %v412, %v411
    %v414 = vsub.s32 4, %v390
    %v415 = vsel %vm330, %v414, %v390
    %v416 = vsel %vm329, %v120, %v413
    %v417 = vsel %vm329, 0, %v415
    %v418 = vcosq.f32.pop %v416
    %v419 = vsinq.f32.pop %v416
    %vm420 = vweird.f32 %v120
    %v421 = vand.u32 %v417, 3
    %vm422 = vcmp.lt.s32.totalorder %v421, 2
    %vm423 = vcmp.eq.s32.totalorder %v421, 0
    %v424 = vxor.u32 %v419, 2147483648
    %v425 = vsel %vm423, %v418, %v424
    %vm426 = vcmp.eq.s32.totalorder %v421, 2
    %v427 = vxor.u32 %v418, 2147483648
    %v428 = vsel %vm426, %v427, %v419
    %v429 = vsel %vm422, %v425, %v428
    %v430 = vsel %vm420, nan, %v429
    %v431 = vand.u32 2147483647, %v121
    %vm432 = vcmp.le.f32.partialorder %v431, 0.7853982
    %vm433 = vcmp.lt.s32.totalorder %v121, 0
    %v434 = vand.u32 %v121, 2139095040
    %v435 = vshrl.u32 %v434, 23
    %v436 = vsub.s32 %v435, 127
    %v437 = vand.u32 2147483647, %v121
    %v438 = vand.u32 %v437, 8388607
    %v439 = vor.u32 %v438, 8388608
    %v440 = vsub.s32 0, %v439
    %v441 = vadd.s32 %v436, 1
    %vm442 = vcmp.gt.s32.totalorder %v441, 0
    %v443 = vsel %vm442, %v441, 0
    %v444 = vshrl.u32 %v443, 5
    %v445 = vand.u32 %v443, 31
    %v446 = vsub.s32 32, %v445
    %v447 = vshrl.u32 683565275, %v446
    %v448 = vshll.u32 683565275, %v445
    %v449 = vshrl.u32 2475754826, %v446
    %v450 = vor.u32 %v448, %v449
    %v451 = vshll.u32 2475754826, %v445
    %v452 = vshrl.u32 2131351028, %v446
    %v453 = vor.u32 %v451, %v452
    %v454 = vshll.u32 2131351028, %v445
    %v455 = vshrl.u32 2102212464, %v446
    %v456 = vor.u32 %v454, %v455
    %v457 = vshll.u32 2102212464, %v445
    %v458 = vshrl.u32 920167782, %v446
    %v459 = vor.u32 %v457, %v458
    %v460 = vshll.u32 920167782, %v445
    %v461 = vshrl.u32 1326507024, %v446
    %v462 = vor.u32 %v460, %v461
    %vm463 = vcmp.lt.s32.totalorder %v444, 1
    %vm464 = vcmp.lt.s32.totalorder %v444, 2
    %vm465 = vcmp.lt.s32.totalorder %v444, 3
    %vm466 = vcmp.lt.s32.totalorder %v444, 4
    %v467 = vsel %vm463, %v447, %v450
    %v468 = vsel %vm466, %v456, 2102212464
    %v469 = vsel %vm465, %v453, %v468
    %v470 = vsel %vm464, %v467, %v469
    %v471 = vsel %vm463, %v450, %v453
    %v472 = vsel %vm466, %v459, 920167782
    %v473 = vsel %vm465, %v456, %v472
    %v474 = vsel %vm464, %v471, %v473
    %v475 = vsel %vm463, %v453, %v456
    %v476 = vsel %vm466, %v462, 1326507024
    %v477 = vsel %vm465, %v459, %v476
    %v478 = vsel %vm464, %v475, %v477
    %v479 = vshll.u32 %v439, 8
    %v480 = vmul.u32.u64.compose %v479, %v478
    %v481 = vextract.low.u32 %v480
    %v482 = vextract.high.u32 %v480
    %v483 = vmul.u32.u64.compose %v479, %v474
    %v484 = vextract.low.u32 %v483
    %v485 = vextract.high.u32 %v483
    %v486 = vmul.u32 %v479, %v470
    %v487 = vadd.s32 %v482, %v484
    %vm488 = vc.u32 %v482, %v484
    %v489 = vadd.s32 %v485, 1
    %v490 = vsel %vm488, %v489, %v485
    %v491 = vadd.s32 %v486, %v490
    %v492 = vadd.s32 %v491, 536870912
    %v493 = vshrl.u32 %v492, 30
    %v494 = vshll.u32 %v493, 30
    %v495 = vsub.s32 %v491, %v494
    %vm496 = vcmp.lt.s32.totalorder %v495, 0
    %v497 = vsub.s32 0, %v495
    %v498 = vsel %vm496, %v497, %v495
    %v499 = vclz %v498
    %v500 = vsub.s32 %v499, 2
    %vm501 = vcmp.gt.s32.totalorder 0, %v500
    %v502 = vsel %vm501, 0, %v500
    %v503 = vsub.s32 32, %v502
    %v504 = vshll.u32 %v495, %v502
    %v505 = vshrl.u32 %v487, %v503
    %v506 = vor.u32 %v504, %v505
    %v507 = vsub.s32 4294967266, %v502
    %v508 = vadd.s32 %v507, 127
    %v509 = vshll.u32 %v508, 23
    %v510 = vor.u32 4788187, %v509
    %v511 = vand.u32 2147483647, %v510
    %v513 = vcvt.s32.f32 %v506
    %v514 = vmul.f32 %v513, %v511
    %v515 = vxor.u32 %v514, 2147483648
    %v516 = vsel %vm433, %v515, %v514
    %v517 = vsub.s32 4, %v493
    %v518 = vsel %vm433, %v517, %v493
    %v519 = vsel %vm432, %v121, %v516
    %v520 = vsel %vm432, 0, %v518
    %v521 = vcosq.f32.pop %v519
    %v522 = vsinq.f32.pop %v519
    %vm523 = vweird.f32 %v121
    %v524 = vand.u32 %v520, 3
    %vm525 = vcmp.lt.s32.totalorder %v524, 2
    %vm526 = vcmp.eq.s32.totalorder %v524, 0
    %v527 = vxor.u32 %v522, 2147483648
    %v528 = vsel %vm526, %v521, %v527
    %vm529 = vcmp.eq.s32.totalorder %v524, 2
    %v530 = vxor.u32 %v521, 2147483648
    %v531 = vsel %vm529, %v530, %v522
    %v532 = vsel %vm525, %v528, %v531
    %v533 = vsel %vm523, nan, %v532
    %v538 = vrot.slane %v224, 4
    %v539 = vrot.slane %v327, 4
    %v540 = vrot.slane %v430, 4
    %v541 = vrot.slane %v533, 4
    %v546 = vmul.f32 %v96, %v538
    %v547 = vmul.f32 %v103, %v539
    %v548 = vmul.f32 %v110, %v540
    %v549 = vmul.f32 %v117, %v541
    %v550 = vand.u32 2147483647, %v118
    %vm551 = vcmp.le.f32.partialorder %v550, 0.7853982
    %vm552 = vcmp.lt.s32.totalorder %v118, 0
    %v553 = vand.u32 %v118, 2139095040
    %v554 = vshrl.u32 %v553, 23
    %v555 = vsub.s32 %v554, 127
    %v556 = vand.u32 2147483647, %v118
    %v557 = vand.u32 %v556, 8388607
    %v558 = vor.u32 %v557, 8388608
    %v559 = vsub.s32 0, %v558
    %v560 = vadd.s32 %v555, 1
    %vm561 = vcmp.gt.s32.totalorder %v560, 0
    %v562 = vsel %vm561, %v560, 0
    %v563 = vshrl.u32 %v562, 5
    %v564 = vand.u32 %v562, 31
    %v565 = vsub.s32 32, %v564
    %v566 = vshrl.u32 683565275, %v565
    %v567 = vshll.u32 683565275, %v564
    %v568 = vshrl.u32 2475754826, %v565
    %v569 = vor.u32 %v567, %v568
    %v570 = vshll.u32 2475754826, %v564
    %v571 = vshrl.u32 2131351028, %v565
    %v572 = vor.u32 %v570, %v571
    %v573 = vshll.u32 2131351028, %v564
    %v574 = vshrl.u32 2102212464, %v565
    %v575 = vor.u32 %v573, %v574
    %v576 = vshll.u32 2102212464, %v564
    %v577 = vshrl.u32 920167782, %v565
    %v578 = vor.u32 %v576, %v577
    %v579 = vshll.u32 920167782, %v564
    %v580 = vshrl.u32 1326507024, %v565
    %v581 = vor.u32 %v579, %v580
    %vm582 = vcmp.lt.s32.totalorder %v563, 1
    %vm583 = vcmp.lt.s32.totalorder %v563, 2
    %vm584 = vcmp.lt.s32.totalorder %v563, 3
    %vm585 = vcmp.lt.s32.totalorder %v563, 4
    %v586 = vsel %vm582, %v566, %v569
    %v587 = vsel %vm585, %v575, 2102212464
    %v588 = vsel %vm584, %v572, %v587
    %v589 = vsel %vm583, %v586, %v588
    %v590 = vsel %vm582, %v569, %v572
    %v591 = vsel %vm585, %v578, 920167782
    %v592 = vsel %vm584, %v575, %v591
    %v593 = vsel %vm583, %v590, %v592
    %v594 = vsel %vm582, %v572, %v575
    %v595 = vsel %vm585, %v581, 1326507024
    %v596 = vsel %vm584, %v578, %v595
    %v597 = vsel %vm583, %v594, %v596
    %v598 = vshll.u32 %v558, 8
    %v599 = vmul.u32.u64.compose %v598, %v597
    %v600 = vextract.low.u32 %v599
    %v601 = vextract.high.u32 %v599
    %v602 = vmul.u32.u64.compose %v598, %v593
    %v603 = vextract.low.u32 %v602
    %v604 = vextract.high.u32 %v602
    %v605 = vmul.u32 %v598, %v589
    %v606 = vadd.s32 %v601, %v603
    %vm607 = vc.u32 %v601, %v603
    %v608 = vadd.s32 %v604, 1
    %v609 = vsel %vm607, %v608, %v604
    %v610 = vadd.s32 %v605, %v609
    %v611 = vadd.s32 %v610, 536870912
    %v612 = vshrl.u32 %v611, 30
    %v613 = vshll.u32 %v612, 30
    %v614 = vsub.s32 %v610, %v613
    %vm615 = vcmp.lt.s32.totalorder %v614, 0
    %v616 = vsub.s32 0, %v614
    %v617 = vsel %vm615, %v616, %v614
    %v618 = vclz %v617
    %v619 = vsub.s32 %v618, 2
    %vm620 = vcmp.gt.s32.totalorder 0, %v619
    %v621 = vsel %vm620, 0, %v619
    %v622 = vsub.s32 32, %v621
    %v623 = vshll.u32 %v614, %v621
    %v624 = vshrl.u32 %v606, %v622
    %v625 = vor.u32 %v623, %v624
    %v626 = vsub.s32 4294967266, %v621
    %v627 = vadd.s32 %v626, 127
    %v628 = vshll.u32 %v627, 23
    %v629 = vor.u32 4788187, %v628
    %v630 = vand.u32 2147483647, %v629
    %v632 = vcvt.s32.f32 %v625
    %v633 = vmul.f32 %v632, %v630
    %v634 = vxor.u32 %v633, 2147483648
    %v635 = vsel %vm552, %v634, %v633
    %v636 = vsub.s32 4, %v612
    %v637 = vsel %vm552, %v636, %v612
    %v638 = vsel %vm551, %v118, %v635
    %v639 = vsel %vm551, 0, %v637
    %v640 = vcosq.f32.pop %v638
    %v641 = vsinq.f32.pop %v638
    %vm642 = vweird.f32 %v118
    %v643 = vadd.s32 %v639, 3
    %v644 = vand.u32 %v643, 3
    %vm645 = vcmp.lt.s32.totalorder %v644, 2
    %vm646 = vcmp.eq.s32.totalorder %v644, 0
    %v647 = vxor.u32 %v641, 2147483648
    %v648 = vsel %vm646, %v640, %v647
    %vm649 = vcmp.eq.s32.totalorder %v644, 2
    %v650 = vxor.u32 %v640, 2147483648
    %v651 = vsel %vm649, %v650, %v641
    %v652 = vsel %vm645, %v648, %v651
    %v653 = vsel %vm642, nan, %v652
    %v654 = vand.u32 2147483647, %v119
    %vm655 = vcmp.le.f32.partialorder %v654, 0.7853982
    %vm656 = vcmp.lt.s32.totalorder %v119, 0
    %v657 = vand.u32 %v119, 2139095040
    %v658 = vshrl.u32 %v657, 23
    %v659 = vsub.s32 %v658, 127
    %v660 = vand.u32 2147483647, %v119
    %v661 = vand.u32 %v660, 8388607
    %v662 = vor.u32 %v661, 8388608
    %v663 = vsub.s32 0, %v662
    %v664 = vadd.s32 %v659, 1
    %vm665 = vcmp.gt.s32.totalorder %v664, 0
    %v666 = vsel %vm665, %v664, 0
    %v667 = vshrl.u32 %v666, 5
    %v668 = vand.u32 %v666, 31
    %v669 = vsub.s32 32, %v668
    %v670 = vshrl.u32 683565275, %v669
    %v671 = vshll.u32 683565275, %v668
    %v672 = vshrl.u32 2475754826, %v669
    %v673 = vor.u32 %v671, %v672
    %v674 = vshll.u32 2475754826, %v668
    %v675 = vshrl.u32 2131351028, %v669
    %v676 = vor.u32 %v674, %v675
    %v677 = vshll.u32 2131351028, %v668
    %v678 = vshrl.u32 2102212464, %v669
    %v679 = vor.u32 %v677, %v678
    %v680 = vshll.u32 2102212464, %v668
    %v681 = vshrl.u32 920167782, %v669
    %v682 = vor.u32 %v680, %v681
    %v683 = vshll.u32 920167782, %v668
    %v684 = vshrl.u32 1326507024, %v669
    %v685 = vor.u32 %v683, %v684
    %vm686 = vcmp.lt.s32.totalorder %v667, 1
    %vm687 = vcmp.lt.s32.totalorder %v667, 2
    %vm688 = vcmp.lt.s32.totalorder %v667, 3
    %vm689 = vcmp.lt.s32.totalorder %v667, 4
    %v690 = vsel %vm686, %v670, %v673
    %v691 = vsel %vm689, %v679, 2102212464
    %v692 = vsel %vm688, %v676, %v691
    %v693 = vsel %vm687, %v690, %v692
    %v694 = vsel %vm686, %v673, %v676
    %v695 = vsel %vm689, %v682, 920167782
    %v696 = vsel %vm688, %v679, %v695
    %v697 = vsel %vm687, %v694, %v696
    %v698 = vsel %vm686, %v676, %v679
    %v699 = vsel %vm689, %v685, 1326507024
    %v700 = vsel %vm688, %v682, %v699
    %v701 = vsel %vm687, %v698, %v700
    %v702 = vshll.u32 %v662, 8
    %v703 = vmul.u32.u64.compose %v702, %v701
    %v704 = vextract.low.u32 %v703
    %v705 = vextract.high.u32 %v703
    %v706 = vmul.u32.u64.compose %v702, %v697
    %v707 = vextract.low.u32 %v706
    %v708 = vextract.high.u32 %v706
    %v709 = vmul.u32 %v702, %v693
    %v710 = vadd.s32 %v705, %v707
    %vm711 = vc.u32 %v705, %v707
    %v712 = vadd.s32 %v708, 1
    %v713 = vsel %vm711, %v712, %v708
    %v714 = vadd.s32 %v709, %v713
    %v715 = vadd.s32 %v714, 536870912
    %v716 = vshrl.u32 %v715, 30
    %v717 = vshll.u32 %v716, 30
    %v718 = vsub.s32 %v714, %v717
    %vm719 = vcmp.lt.s32.totalorder %v718, 0
    %v720 = vsub.s32 0, %v718
    %v721 = vsel %vm719, %v720, %v718
    %v722 = vclz %v721
    %v723 = vsub.s32 %v722, 2
    %vm724 = vcmp.gt.s32.totalorder 0, %v723
    %v725 = vsel %vm724, 0, %v723
    %v726 = vsub.s32 32, %v725
    %v727 = vshll.u32 %v718, %v725
    %v728 = vshrl.u32 %v710, %v726
    %v729 = vor.u32 %v727, %v728
    %v730 = vsub.s32 4294967266, %v725
    %v731 = vadd.s32 %v730, 127
    %v732 = vshll.u32 %v731, 23
    %v733 = vor.u32 4788187, %v732
    %v734 = vand.u32 2147483647, %v733
    %v736 = vcvt.s32.f32 %v729
    %v737 = vmul.f32 %v736, %v734
    %v738 = vxor.u32 %v737, 2147483648
    %v739 = vsel %vm656, %v738, %v737
    %v740 = vsub.s32 4, %v716
    %v741 = vsel %vm656, %v740, %v716
    %v742 = vsel %vm655, %v119, %v739
    %v743 = vsel %vm655, 0, %v741
    %v744 = vcosq.f32.pop %v742
    %v745 = vsinq.f32.pop %v742
    %vm746 = vweird.f32 %v119
    %v747 = vadd.s32 %v743, 3
    %v748 = vand.u32 %v747, 3
    %vm749 = vcmp.lt.s32.totalorder %v748, 2
    %vm750 = vcmp.eq.s32.totalorder %v748, 0
    %v751 = vxor.u32 %v745, 2147483648
    %v752 = vsel %vm750, %v744, %v751
    %vm753 = vcmp.eq.s32.totalorder %v748, 2
    %v754 = vxor.u32 %v744, 2147483648
    %v755 = vsel %vm753, %v754, %v745
    %v756 = vsel %vm749, %v752, %v755
    %v757 = vsel %vm746, nan, %v756
    %v758 = vand.u32 2147483647, %v120
    %vm759 = vcmp.le.f32.partialorder %v758, 0.7853982
    %vm760 = vcmp.lt.s32.totalorder %v120, 0
    %v761 = vand.u32 %v120, 2139095040
    %v762 = vshrl.u32 %v761, 23
    %v763 = vsub.s32 %v762, 127
    %v764 = vand.u32 2147483647, %v120
    %v765 = vand.u32 %v764, 8388607
    %v766 = vor.u32 %v765, 8388608
    %v767 = vsub.s32 0, %v766
    %v768 = vadd.s32 %v763, 1
    %vm769 = vcmp.gt.s32.totalorder %v768, 0
    %v770 = vsel %vm769, %v768, 0
    %v771 = vshrl.u32 %v770, 5
    %v772 = vand.u32 %v770, 31
    %v773 = vsub.s32 32, %v772
    %v774 = vshrl.u32 683565275, %v773
    %v775 = vshll.u32 683565275, %v772
    %v776 = vshrl.u32 2475754826, %v773
    %v777 = vor.u32 %v775, %v776
    %v778 = vshll.u32 2475754826, %v772
    %v779 = vshrl.u32 2131351028, %v773
    %v780 = vor.u32 %v778, %v779
    %v781 = vshll.u32 2131351028, %v772
    %v782 = vshrl.u32 2102212464, %v773
    %v783 = vor.u32 %v781, %v782
    %v784 = vshll.u32 2102212464, %v772
    %v785 = vshrl.u32 920167782, %v773
    %v786 = vor.u32 %v784, %v785
    %v787 = vshll.u32 920167782, %v772
    %v788 = vshrl.u32 1326507024, %v773
    %v789 = vor.u32 %v787, %v788
    %vm790 = vcmp.lt.s32.totalorder %v771, 1
    %vm791 = vcmp.lt.s32.totalorder %v771, 2
    %vm792 = vcmp.lt.s32.totalorder %v771, 3
    %vm793 = vcmp.lt.s32.totalorder %v771, 4
    %v794 = vsel %vm790, %v774, %v777
    %v795 = vsel %vm793, %v783, 2102212464
    %v796 = vsel %vm792, %v780, %v795
    %v797 = vsel %vm791, %v794, %v796
    %v798 = vsel %vm790, %v777, %v780
    %v799 = vsel %vm793, %v786, 920167782
    %v800 = vsel %vm792, %v783, %v799
    %v801 = vsel %vm791, %v798, %v800
    %v802 = vsel %vm790, %v780, %v783
    %v803 = vsel %vm793, %v789, 1326507024
    %v804 = vsel %vm792, %v786, %v803
    %v805 = vsel %vm791, %v802, %v804
    %v806 = vshll.u32 %v766, 8
    %v807 = vmul.u32.u64.compose %v806, %v805
    %v808 = vextract.low.u32 %v807
    %v809 = vextract.high.u32 %v807
    %v810 = vmul.u32.u64.compose %v806, %v801
    %v811 = vextract.low.u32 %v810
    %v812 = vextract.high.u32 %v810
    %v813 = vmul.u32 %v806, %v797
    %v814 = vadd.s32 %v809, %v811
    %vm815 = vc.u32 %v809, %v811
    %v816 = vadd.s32 %v812, 1
    %v817 = vsel %vm815, %v816, %v812
    %v818 = vadd.s32 %v813, %v817
    %v819 = vadd.s32 %v818, 536870912
    %v820 = vshrl.u32 %v819, 30
    %v821 = vshll.u32 %v820, 30
    %v822 = vsub.s32 %v818, %v821
    %vm823 = vcmp.lt.s32.totalorder %v822, 0
    %v824 = vsub.s32 0, %v822
    %v825 = vsel %vm823, %v824, %v822
    %v826 = vclz %v825
    %v827 = vsub.s32 %v826, 2
    %vm828 = vcmp.gt.s32.totalorder 0, %v827
    %v829 = vsel %vm828, 0, %v827
    %v830 = vsub.s32 32, %v829
    %v831 = vshll.u32 %v822, %v829
    %v832 = vshrl.u32 %v814, %v830
    %v833 = vor.u32 %v831, %v832
    %v834 = vsub.s32 4294967266, %v829
    %v835 = vadd.s32 %v834, 127
    %v836 = vshll.u32 %v835, 23
    %v837 = vor.u32 4788187, %v836
    %v838 = vand.u32 2147483647, %v837
    %v840 = vcvt.s32.f32 %v833
    %v841 = vmul.f32 %v840, %v838
    %v842 = vxor.u32 %v841, 2147483648
    %v843 = vsel %vm760, %v842, %v841
    %v844 = vsub.s32 4, %v820
    %v845 = vsel %vm760, %v844, %v820
    %v846 = vsel %vm759, %v120, %v843
    %v847 = vsel %vm759, 0, %v845
    %v848 = vcosq.f32.pop %v846
    %v849 = vsinq.f32.pop %v846
    %vm850 = vweird.f32 %v120
    %v851 = vadd.s32 %v847, 3
    %v852 = vand.u32 %v851, 3
    %vm853 = vcmp.lt.s32.totalorder %v852, 2
    %vm854 = vcmp.eq.s32.totalorder %v852, 0
    %v855 = vxor.u32 %v849, 2147483648
    %v856 = vsel %vm854, %v848, %v855
    %vm857 = vcmp.eq.s32.totalorder %v852, 2
    %v858 = vxor.u32 %v848, 2147483648
    %v859 = vsel %vm857, %v858, %v849
    %v860 = vsel %vm853, %v856, %v859
    %v861 = vsel %vm850, nan, %v860
    %v862 = vand.u32 2147483647, %v121
    %vm863 = vcmp.le.f32.partialorder %v862, 0.7853982
    %vm864 = vcmp.lt.s32.totalorder %v121, 0
    %v865 = vand.u32 %v121, 2139095040
    %v866 = vshrl.u32 %v865, 23
    %v867 = vsub.s32 %v866, 127
    %v868 = vand.u32 2147483647, %v121
    %v869 = vand.u32 %v868, 8388607
    %v870 = vor.u32 %v869, 8388608
    %v871 = vsub.s32 0, %v870
    %v872 = vadd.s32 %v867, 1
    %vm873 = vcmp.gt.s32.totalorder %v872, 0
    %v874 = vsel %vm873, %v872, 0
    %v875 = vshrl.u32 %v874, 5
    %v876 = vand.u32 %v874, 31
    %v877 = vsub.s32 32, %v876
    %v878 = vshrl.u32 683565275, %v877
    %v879 = vshll.u32 683565275, %v876
    %v880 = vshrl.u32 2475754826, %v877
    %v881 = vor.u32 %v879, %v880
    %v882 = vshll.u32 2475754826, %v876
    %v883 = vshrl.u32 2131351028, %v877
    %v884 = vor.u32 %v882, %v883
    %v885 = vshll.u32 2131351028, %v876
    %v886 = vshrl.u32 2102212464, %v877
    %v887 = vor.u32 %v885, %v886
    %v888 = vshll.u32 2102212464, %v876
    %v889 = vshrl.u32 920167782, %v877
    %v890 = vor.u32 %v888, %v889
    %v891 = vshll.u32 920167782, %v876
    %v892 = vshrl.u32 1326507024, %v877
    %v893 = vor.u32 %v891, %v892
    %vm894 = vcmp.lt.s32.totalorder %v875, 1
    %vm895 = vcmp.lt.s32.totalorder %v875, 2
    %vm896 = vcmp.lt.s32.totalorder %v875, 3
    %vm897 = vcmp.lt.s32.totalorder %v875, 4
    %v898 = vsel %vm894, %v878, %v881
    %v899 = vsel %vm897, %v887, 2102212464
    %v900 = vsel %vm896, %v884, %v899
    %v901 = vsel %vm895, %v898, %v900
    %v902 = vsel %vm894, %v881, %v884
    %v903 = vsel %vm897, %v890, 920167782
    %v904 = vsel %vm896, %v887, %v903
    %v905 = vsel %vm895, %v902, %v904
    %v906 = vsel %vm894, %v884, %v887
    %v907 = vsel %vm897, %v893, 1326507024
    %v908 = vsel %vm896, %v890, %v907
    %v909 = vsel %vm895, %v906, %v908
    %v910 = vshll.u32 %v870, 8
    %v911 = vmul.u32.u64.compose %v910, %v909
    %v912 = vextract.low.u32 %v911
    %v913 = vextract.high.u32 %v911
    %v914 = vmul.u32.u64.compose %v910, %v905
    %v915 = vextract.low.u32 %v914
    %v916 = vextract.high.u32 %v914
    %v917 = vmul.u32 %v910, %v901
    %v918 = vadd.s32 %v913, %v915
    %vm919 = vc.u32 %v913, %v915
    %v920 = vadd.s32 %v916, 1
    %v921 = vsel %vm919, %v920, %v916
    %v922 = vadd.s32 %v917, %v921
    %v923 = vadd.s32 %v922, 536870912
    %v924 = vshrl.u32 %v923, 30
    %v925 = vshll.u32 %v924, 30
    %v926 = vsub.s32 %v922, %v925
    %vm927 = vcmp.lt.s32.totalorder %v926, 0
    %v928 = vsub.s32 0, %v926
    %v929 = vsel %vm927, %v928, %v926
    %v930 = vclz %v929
    %v931 = vsub.s32 %v930, 2
    %vm932 = vcmp.gt.s32.totalorder 0, %v931
    %v933 = vsel %vm932, 0, %v931
    %v934 = vsub.s32 32, %v933
    %v935 = vshll.u32 %v926, %v933
    %v936 = vshrl.u32 %v918, %v934
    %v937 = vor.u32 %v935, %v936
    %v938 = vsub.s32 4294967266, %v933
    %v939 = vadd.s32 %v938, 127
    %v940 = vshll.u32 %v939, 23
    %v941 = vor.u32 4788187, %v940
    %v942 = vand.u32 2147483647, %v941
    %v944 = vcvt.s32.f32 %v937
    %v945 = vmul.f32 %v944, %v942
    %v946 = vxor.u32 %v945, 2147483648
    %v947 = vsel %vm864, %v946, %v945
    %v948 = vsub.s32 4, %v924
    %v949 = vsel %vm864, %v948, %v924
    %v950 = vsel %vm863, %v121, %v947
    %v951 = vsel %vm863, 0, %v949
    %v952 = vcosq.f32.pop %v950
    %v953 = vsinq.f32.pop %v950
    %vm954 = vweird.f32 %v121
    %v955 = vadd.s32 %v951, 3
    %v956 = vand.u32 %v955, 3
    %vm957 = vcmp.lt.s32.totalorder %v956, 2
    %vm958 = vcmp.eq.s32.totalorder %v956, 0
    %v959 = vxor.u32 %v953, 2147483648
    %v960 = vsel %vm958, %v952, %v959
    %vm961 = vcmp.eq.s32.totalorder %v956, 2
    %v962 = vxor.u32 %v952, 2147483648
    %v963 = vsel %vm961, %v962, %v953
    %v964 = vsel %vm957, %v960, %v963
    %v965 = vsel %vm954, nan, %v964
    %v970 = vrot.slane %v653, 4
    %v971 = vrot.slane %v757, 4
    %v972 = vrot.slane %v861, 4
    %v973 = vrot.slane %v965, 4
    %v978 = vmul.f32 %v96, %v970
    %v979 = vmul.f32 %v103, %v971
    %v980 = vmul.f32 %v110, %v972
    %v981 = vmul.f32 %v117, %v973
    %v986 = vrot.slane %v978, 4
    %v987 = vrot.slane %v979, 4
    %v988 = vrot.slane %v980, 4
    %v989 = vrot.slane %v981, 4
    %vm994 = vcmask 1043456
    %v995 = vsel %vm994, %v546, %v986
    %v996 = vsel %vm994, %v547, %v987
    %v997 = vsel %vm994, %v548, %v988
    %v998 = vsel %vm994, %v549, %v989
    %v999 = vmul.f32 %v995, 0.1
    %v1000 = vmul.f32 %v996, 0.1
    %v1001 = vmul.f32 %v997, 0.1
    %v1002 = vmul.f32 %v998, 0.1
    %v1003 = vadd.f32 %v50, %v999
    %v1004 = vadd.f32 %v51, %v1000
    %v1005 = vadd.f32 %v52, %v1001
    %v1006 = vadd.f32 %v53, %v1002
    %v1007 = vld [vmem:[#allocation7] sm:$0xff]
    %v1008 = vld [vmem:[#allocation7 + $0x8] sm:$0xff]
    %v1009 = vld [vmem:[#allocation7 + $0x10] sm:$0xff]
    %v1010 = vld [vmem:[#allocation7 + $0x18] sm:$0xff]
    %v1011 = vshrl.u32 %v1007, 1
    %v1012 = vshrl.u32 %v1008, 1
    %v1013 = vshrl.u32 %v1009, 1
    %v1014 = vshrl.u32 %v1010, 1
    %vm1015 = vcmp.ge.u32.totalorder %v1011, 429496730
    %vm1016 = vcmp.ge.u32.totalorder %v1012, 429496730
    %vm1017 = vcmp.ge.u32.totalorder %v1013, 429496730
    %vm1018 = vcmp.ge.u32.totalorder %v1014, 429496730
    %v1019 = vmul.f32 %v1003, 1.25
    %v1020 = vmul.f32 %v1004, 1.25
    %v1021 = vmul.f32 %v1005, 1.25
    %v1022 = vmul.f32 %v1006, 1.25
    %v1023 = vsel %vm1015, %v1019, 0.0
    %v1024 = vsel %vm1016, %v1020, 0.0
    %v1025 = vsel %vm1017, %v1021, 0.0
    %v1026 = vsel %vm1018, %v1022, 0.0
    %1027 = vst [vmem:[#allocation8] sm:$0xff] %v1023
    %1028 = vst [vmem:[#allocation8 + $0x8] sm:$0xff] %v1024
    %1029 = vst [vmem:[#allocation8 + $0x10] sm:$0xff] %v1025
    %1030 = vst [vmem:[#allocation8 + $0x18] sm:$0xff] %v1026
    // Predicated region
    $region26: #{tpu_custom_call.1} parent=1 // pred_check
      _
    $region27: #{tpu_custom_call.1} parent=1 // pred_check_branch
      %1032 = sbr.rel (0) target = $region29
    $region28: #{tpu_custom_call.1} parent=1 // pred_region
      %s1034 = ssub.s32 512, 512
      %1035 = vsyncadd [#allocation4], %s1034
      %s1037 = sshll.u32 [#allocation8], 4
      %s1038 = int_to_ptr.vmem [resolvable:$true] %s1037
      %1040 = dma.vmem_to_hbm [thread:$0]  %s1038, 512, %s3, [#allocation4]
    $region29: #{tpu_custom_call.1} parent=1 // pred_fallthru
      _
    // Predicated region
    $region30: #{tpu_custom_call.1} parent=1 // pred_check
      _
    $region31: #{tpu_custom_call.1} parent=1 // pred_check_branch
      %1042 = sbr.rel (0) target = $region33
    $region32: #{tpu_custom_call.1} parent=1 // pred_region
      %1043 = dma.done [#allocation4], 512
    $region33: #{tpu_custom_call.1} parent=1 // pred_fallthru
      _
    %1044 = vsyncpa [#allocation3], 1
    %1045 = vsyncpa [#allocation6], 1
    %1046 = vsyncpa [#allocation4], 1

</llo_original>
